<compile_context>
chip_gen: v7x
topology: tpu7x:2x2x1
jax: 0.10.0
libtpu: 0.0.40
codegen_flags: <defaults>
</compile_context>

<pallas_src>
import jax
import jax.numpy as jnp
from jax import lax
from jax.experimental import pallas as pl
from jax.experimental.pallas import tpu as pltpu

LN_EPS = 1e-5


def _make_kernel(has_residual: bool, eps: float):
    def kernel(*refs):
        if has_residual:
            (h_ref, r_ref, temb_ref, gamma_ref, beta_ref, w_ref, bmix_ref,
             hs_out_ref, res_out_ref, y_scr) = refs
        else:
            (h_ref, temb_ref, gamma_ref, beta_ref, w_ref, bmix_ref,
             hs_out_ref, res_out_ref, y_scr) = refs
            r_ref = None

        n = pl.program_id(2)

        # add + temb + LayerNorm runs once per row tile (innermost N axis, n == 0);
        # the normalized activations are cached in VMEM and reused for every weight slab.
        @pl.when(n == 0)
        def _():
            x = h_ref[...].astype(jnp.float32)
            if r_ref is not None:
                x = x + r_ref[...].astype(jnp.float32)
            x = x + temb_ref[...].astype(jnp.float32)            # (1, D) bcast over rows
            res_out_ref[...] = x.astype(res_out_ref.dtype)       # resident across n

            mean = jnp.mean(x, axis=-1, keepdims=True)
            cen = x - mean
            var = jnp.mean(cen * cen, axis=-1, keepdims=True)
            xn = cen * lax.rsqrt(var + eps)
            y = (xn * gamma_ref[...].astype(jnp.float32)
                 + beta_ref[...].astype(jnp.float32))
            y_scr[...] = y.astype(y_scr.dtype)

        # mixer stand-in: dense D -> Dn slab on the MXU, f32 accumulation.
        out = jnp.dot(y_scr[...], w_ref[...], preferred_element_type=jnp.float32)
        out = out + bmix_ref[...].astype(jnp.float32)
        hs_out_ref[...] = out.astype(hs_out_ref.dtype)

    return kernel


def _const_spec(shape, index_map, single_buffer):
    """BlockSpec that (when requested) asks for a single VMEM buffer."""
    if single_buffer:
        try:
            return pl.BlockSpec(shape, index_map,
                                pipeline_mode=pl.Buffered(buffer_count=1))
        except TypeError:
            return pl.BlockSpec(shape, index_map)
    return pl.BlockSpec(shape, index_map)


def block_with_timestep_embed(hidden_states, temb, residual, gamma, beta,
                              w_mix, b_mix, *, tile_rows=None,
                              residual_in_fp32=True, mixer_matmul_dtype=None):
    """hidden_states / residual: (B, L, D); temb: (B, 1, D), broadcast over L.

    Returns (hidden_states_out (B,L,D) in input dtype,
             residual_out (B,L,D) in fp32 when residual_in_fp32 else input dtype).
    D should ideally be a multiple of 128 for lane-dense stores / full MXU passes.
    """
    B, L, D = hidden_states.shape
    in_dtype = hidden_states.dtype
    res_dtype = jnp.float32 if residual_in_fp32 else in_dtype
    has_residual = residual is not None

    mm_dtype = (jnp.dtype(mixer_matmul_dtype) if mixer_matmul_dtype is not None
                else jnp.dtype(w_mix.dtype))
    w = w_mix if w_mix.dtype == mm_dtype else w_mix.astype(mm_dtype)

    in_b = jnp.dtype(in_dtype).itemsize
    r_b = jnp.dtype(residual.dtype).itemsize if has_residual else 0
    res_b = jnp.dtype(res_dtype).itemsize
    w_b = jnp.dtype(mm_dtype).itemsize

    # ---- generation-aware VMEM budget (v5e/v6e: 128 MiB, v7x: 64 MiB physical) ----
    try:
        phys_vmem = int(pltpu.get_tpu_info().vmem_capacity_bytes)
    except Exception:
        phys_vmem = 64 << 20
    vmem_budget = min(int(phys_vmem * 0.72), 100 << 20)

    # ---- weight N-split: stream (D, Dn) slabs instead of a huge resident weight ----
    w_budget = max(vmem_budget // 3, 4 << 20)
    n_tiles = 1
    if D % 128 == 0 and D * D * w_b > w_budget:
        n_tiles = D // 128  # fallback: one lane-tile per slab
        for s in range(2, D // 128 + 1):
            if D % s == 0 and (D // s) % 128 == 0 and 2 * D * (D // s) * w_b <= w_budget:
                n_tiles = s
                break
    dn = D // n_tiles

    # ---- row tile on the sublane axis; default depends on the VMEM generation ----
    if tile_rows is None:
        tile_rows = 512 if phys_vmem >= (96 << 20) else 256
    sub = 16 if in_b == 2 else 8
    if L <= tile_rows:
        tile = L                                    # full-extent block is always legal
    else:
        tile = max(sub, (tile_rows // sub) * sub)

    def vmem_need(t):
        need = 2 * t * D * in_b                     # hidden (double-buffered)
        need += 2 * t * D * r_b                     # residual in
        need += 2 * t * dn * in_b                   # hs_out
        need += 2 * t * D * res_b                   # res_out (resident across n)
        need += t * D * w_b                         # y scratch (matmul dtype)
        need += (1 if n_tiles == 1 else 2) * D * dn * w_b   # weight slab(s)
        need += 2 * dn * w_b                        # mixer bias
        need += 3 * t * D * 4                       # f32 LN intermediates (internal scratch)
        need += 2 * D * in_b + 2 * D * 4 + (1 << 20)  # temb / gamma / beta + misc headroom
        return need

    if tile < L:
        while tile > sub and vmem_need(tile) > vmem_budget:
            tile = max(sub, (tile // 2 // sub) * sub)

    vmem_limit = int(min(max(vmem_need(tile) * 6 // 5, 8 << 20),
                         min(phys_vmem * 3 // 4, 100 << 20)))

    l_tiles = pl.cdiv(L, tile)
    grid = (B, l_tiles, n_tiles)

    # Ragged L: the last row block may run past L; Pallas masks the boundary DMA.
    # Tail rows hold unspecified data but every op here is row-independent, so the
    # garbage never leaks into valid rows and OOB stores are dropped.
    row_in_spec = pl.BlockSpec((None, tile, D), lambda b, i, n: (b, i, 0))
    res_out_spec = pl.BlockSpec((None, tile, D), lambda b, i, n: (b, i, 0))
    hs_out_spec = pl.BlockSpec((None, tile, dn), lambda b, i, n: (b, i, n))
    temb_spec = pl.BlockSpec((None, 1, D), lambda b, i, n: (b, 0, 0))
    gamma_spec = _const_spec((1, D), lambda b, i, n: (0, 0), True)
    beta_spec = _const_spec((1, D), lambda b, i, n: (0, 0), True)
    w_spec = _const_spec((D, dn), lambda b, i, n: (0, n), n_tiles == 1)
    bmix_spec = _const_spec((1, dn), lambda b, i, n: (0, n), n_tiles == 1)

    gamma2 = gamma.reshape(1, D)
    beta2 = beta.reshape(1, D)
    bmix2 = b_mix.reshape(1, D)

    if has_residual:
        inputs = (hidden_states, residual, temb, gamma2, beta2, w, bmix2)
        in_specs = [row_in_spec, row_in_spec, temb_spec, gamma_spec, beta_spec,
                    w_spec, bmix_spec]
    else:
        inputs = (hidden_states, temb, gamma2, beta2, w, bmix2)
        in_specs = [row_in_spec, temb_spec, gamma_spec, beta_spec, w_spec, bmix_spec]

    cost = pl.CostEstimate(
        flops=2 * B * L * D * D + 12 * B * L * D,
        transcendentals=B * L,
        bytes_accessed=(B * L * D * (in_b + r_b + in_b + res_b)
                        + D * D * w_b + B * D * in_b + 3 * D * 4))

    hs_out, res_out = pl.pallas_call(
        _make_kernel(has_residual, LN_EPS),
        out_shape=(jax.ShapeDtypeStruct((B, L, D), in_dtype),
                   jax.ShapeDtypeStruct((B, L, D), res_dtype)),
        grid_spec=pltpu.PrefetchScalarGridSpec(
            num_scalar_prefetch=0,
            grid=grid,
            in_specs=in_specs,
            out_specs=[hs_out_spec, res_out_spec],
            scratch_shapes=[pltpu.VMEM((tile, D), mm_dtype)]),
        compiler_params=pltpu.CompilerParams(
            dimension_semantics=("parallel", "parallel", "arbitrary"),
            vmem_limit_bytes=vmem_limit),
        cost_estimate=cost,
    )(*inputs)

    return hs_out, res_out


def reference(hidden_states, temb, residual, gamma, beta, w_mix, b_mix):
    hs = hidden_states.astype(jnp.float32)
    res = hs if residual is None else hs + residual.astype(jnp.float32)
    res = res + temb.astype(jnp.float32)
    mean = jnp.mean(res, axis=-1, keepdims=True)
    var = jnp.mean((res - mean) ** 2, axis=-1, keepdims=True)
    xn = (res - mean) / jnp.sqrt(var + LN_EPS)
    y = xn * gamma.astype(jnp.float32) + beta.astype(jnp.float32)
    hs_out = (jnp.einsum("bld,de->ble", y, w_mix.astype(jnp.float32))
              + b_mix.astype(jnp.float32))
    return hs_out, res


if __name__ == "__main__":
    B, L, D = 2, 8, 32
    key = jax.random.PRNGKey(0)
    k_h, k_r, k_t, k_g, k_b, k_w, k_bm = jax.random.split(key, 7)

    hidden_states = jax.random.normal(k_h, (B, L, D), dtype=jnp.float32)
    residual = jax.random.normal(k_r, (B, L, D), dtype=jnp.float32)
    temb = jax.random.normal(k_t, (B, 1, D), dtype=jnp.float32)

    gamma = 1.0 + 0.01 * jax.random.normal(k_g, (D,), dtype=jnp.float32)
    beta = 0.01 * jax.random.normal(k_b, (D,), dtype=jnp.float32)
    w_mix = jax.random.normal(k_w, (D, D), dtype=jnp.float32) / jnp.sqrt(D)
    b_mix = 0.01 * jax.random.normal(k_bm, (D,), dtype=jnp.float32)

    # 1) fp32, residual provided
    hs_out, res_out = block_with_timestep_embed(
        hidden_states, temb, residual, gamma, beta, w_mix, b_mix)
    jax.block_until_ready((hs_out, res_out))
    hs_ref, res_ref = reference(hidden_states, temb, residual, gamma, beta, w_mix, b_mix)
    assert jnp.allclose(hs_out, hs_ref, atol=1e-4, rtol=1e-4), "hidden_states mismatch"
    assert jnp.allclose(res_out, res_ref, atol=1e-5, rtol=1e-5), "residual mismatch"

    # 2) residual=None path (no zeros materialization, dedicated kernel variant)
    hs0, res0 = block_with_timestep_embed(
        hidden_states, temb, None, gamma, beta, w_mix, b_mix)
    hs0_ref, res0_ref = reference(hidden_states, temb, None, gamma, beta, w_mix, b_mix)
    assert jnp.allclose(hs0, hs0_ref, atol=1e-4, rtol=1e-4), "hs mismatch (no residual)"
    assert jnp.allclose(res0, res0_ref, atol=1e-5, rtol=1e-5), "res mismatch (no residual)"

    # 3) ragged seq-len: L not a multiple of the row tile -> Pallas partial last block
    L2 = 12
    h2 = jax.random.normal(k_h, (B, L2, D), dtype=jnp.float32)
    r2 = jax.random.normal(k_r, (B, L2, D), dtype=jnp.float32)
    hs2, res2 = block_with_timestep_embed(
        h2, temb, r2, gamma, beta, w_mix, b_mix, tile_rows=8)
    hs2_ref, res2_ref = reference(h2, temb, r2, gamma, beta, w_mix, b_mix)
    assert jnp.allclose(hs2, hs2_ref, atol=1e-4, rtol=1e-4), "hs mismatch (ragged L)"
    assert jnp.allclose(res2, res2_ref, atol=1e-5, rtol=1e-5), "res mismatch (ragged L)"

    # 4) bf16 I/O: hs returned in bf16, residual in fp32, bf16 MXU with f32 accumulation
    bf = jnp.bfloat16
    hs_bf, res_bf = block_with_timestep_embed(
        hidden_states.astype(bf), temb.astype(bf), residual.astype(bf),
        gamma.astype(bf), beta.astype(bf), w_mix.astype(bf), b_mix.astype(bf))
    jax.block_until_ready((hs_bf, res_bf))
    assert hs_bf.dtype == bf and res_bf.dtype == jnp.float32
    hs_bf_ref, res_bf_ref = reference(
        hidden_states.astype(bf), temb.astype(bf), residual.astype(bf),
        gamma.astype(bf), beta.astype(bf), w_mix.astype(bf), b_mix.astype(bf))
    assert jnp.allclose(hs_bf.astype(jnp.float32), hs_bf_ref, atol=1e-1, rtol=1e-1)
    assert jnp.allclose(res_bf, res_bf_ref, atol=1e-2, rtol=1e-2)

    print("KERNEL_OK")
</pallas_src>

<mosaic_0001>
module attributes {stable_mosaic.version = 11 : i64} {
  func.func @kernel(%arg0: i32, %arg1: i32, %arg2: i32, %arg3: memref<1x8x32xf32, #tpu.memory_space<vmem>>, %arg4: memref<1x8x32xf32, #tpu.memory_space<vmem>>, %arg5: memref<1x1x32xf32, #tpu.memory_space<vmem>>, %arg6: memref<1x32xf32, #tpu.memory_space<vmem>>, %arg7: memref<1x32xf32, #tpu.memory_space<vmem>>, %arg8: memref<32x32xf32, #tpu.memory_space<vmem>>, %arg9: memref<1x32xf32, #tpu.memory_space<vmem>>, %arg10: memref<1x8x32xf32, #tpu.memory_space<vmem>>, %arg11: memref<1x8x32xf32, #tpu.memory_space<vmem>>, %arg12: memref<8x32xf32, #tpu.memory_space<vmem>>) attributes {dimension_semantics = [#tpu.dimension_semantics<parallel>, #tpu.dimension_semantics<parallel>, #tpu.dimension_semantics<arbitrary>], iteration_bounds = array<i64: 2, 1, 1>, scalar_prefetch = 0 : i64, scratch_operands = 1 : i64, tpu.core_type = #tpu.core_type<tc>, window_params = [{transform_indices = @transform_0, window_bounds = array<i64: 1, 8, 32>}, {transform_indices = @transform_1, window_bounds = array<i64: 1, 8, 32>}, {transform_indices = @transform_2, window_bounds = array<i64: 1, 1, 32>}, {pipeline_mode = #tpu.pipeline_mode<synchronous>, transform_indices = @transform_3, window_bounds = array<i64: 1, 32>}, {pipeline_mode = #tpu.pipeline_mode<synchronous>, transform_indices = @transform_4, window_bounds = array<i64: 1, 32>}, {pipeline_mode = #tpu.pipeline_mode<synchronous>, transform_indices = @transform_5, window_bounds = array<i64: 32, 32>}, {pipeline_mode = #tpu.pipeline_mode<synchronous>, transform_indices = @transform_6, window_bounds = array<i64: 1, 32>}, {transform_indices = @transform_7, window_bounds = array<i64: 1, 8, 32>}, {transform_indices = @transform_8, window_bounds = array<i64: 1, 8, 32>}]} {
    %c0_i32 = arith.constant 0 : i32
    %0 = arith.cmpi eq, %arg2, %c0_i32 : i32
    %1 = arith.extui %0 : i1 to i32
    %c0_i32_0 = arith.constant 0 : i32
    %2 = arith.cmpi ne, %1, %c0_i32_0 : i32
    scf.if %2 {
      %c0_9 = arith.constant 0 : index
      %c0_10 = arith.constant 0 : index
      %c0_11 = arith.constant 0 : index
      %12 = vector.load %arg3[%c0_9, %c0_10, %c0_11] : memref<1x8x32xf32, #tpu.memory_space<vmem>>, vector<1x8x32xf32>
      %13 = vector.shape_cast %12 : vector<1x8x32xf32> to vector<8x32xf32>
      %c0_12 = arith.constant 0 : index
      %c0_13 = arith.constant 0 : index
      %c0_14 = arith.constant 0 : index
      %14 = vector.load %arg4[%c0_12, %c0_13, %c0_14] : memref<1x8x32xf32, #tpu.memory_space<vmem>>, vector<1x8x32xf32>
      %15 = vector.shape_cast %14 : vector<1x8x32xf32> to vector<8x32xf32>
      %16 = arith.addf %13, %15 : vector<8x32xf32>
      %c0_15 = arith.constant 0 : index
      %c0_16 = arith.constant 0 : index
      %c0_17 = arith.constant 0 : index
      %17 = vector.load %arg5[%c0_15, %c0_16, %c0_17] : memref<1x1x32xf32, #tpu.memory_space<vmem>>, vector<1x1x32xf32>
      %18 = vector.shape_cast %17 : vector<1x1x32xf32> to vector<1x32xf32>
      %19 = vector.broadcast %18 : vector<1x32xf32> to vector<8x32xf32>
      %20 = arith.addf %16, %19 : vector<8x32xf32>
      %c0_18 = arith.constant 0 : index
      %c0_19 = arith.constant 0 : index
      %c0_20 = arith.constant 0 : index
      %21 = vector.load %arg11[%c0_18, %c0_19, %c0_20] : memref<1x8x32xf32, #tpu.memory_space<vmem>>, vector<1x8x32xf32>
      %22 = vector.shape_cast %21 : vector<1x8x32xf32> to vector<8x32xf32>
      %23 = vector.shape_cast %20 : vector<8x32xf32> to vector<1x8x32xf32>
      tpu.vector_store %arg11[%c0_18, %c0_19, %c0_20], %23 {strides = array<i32>} : memref<1x8x32xf32, #tpu.memory_space<vmem>>, vector<1x8x32xf32>,
      %cst_21 = arith.constant dense<0.000000e+00> : vector<8xf32>
      %24 = vector.multi_reduction <add>, %20, %cst_21 [1] : vector<8x32xf32> to vector<8xf32>
      %25 = vector.shape_cast %24 : vector<8xf32> to vector<8x1xf32>
      %cst_22 = arith.constant 3.200000e+01 : f32
      %26 = vector.broadcast %cst_22 : f32 to vector<8x1xf32>
      %27 = arith.divf %25, %26 : vector<8x1xf32>
      %28 = vector.broadcast %27 : vector<8x1xf32> to vector<8x32xf32>
      %29 = arith.subf %20, %28 : vector<8x32xf32>
      %30 = arith.mulf %29, %29 : vector<8x32xf32>
      %cst_23 = arith.constant dense<0.000000e+00> : vector<8xf32>
      %31 = vector.multi_reduction <add>, %30, %cst_23 [1] : vector<8x32xf32> to vector<8xf32>
      %32 = vector.shape_cast %31 : vector<8xf32> to vector<8x1xf32>
      %cst_24 = arith.constant 3.200000e+01 : f32
      %33 = vector.broadcast %cst_24 : f32 to vector<8x1xf32>
      %34 = arith.divf %32, %33 : vector<8x1xf32>
      %cst_25 = arith.constant 9.99999974E-6 : f32
      %35 = vector.broadcast %cst_25 : f32 to vector<8x1xf32>
      %36 = arith.addf %34, %35 : vector<8x1xf32>
      %37 = math.rsqrt %36 : vector<8x1xf32>
      %38 = vector.broadcast %37 : vector<8x1xf32> to vector<8x32xf32>
      %39 = arith.mulf %29, %38 : vector<8x32xf32>
      %c0_26 = arith.constant 0 : index
      %c0_27 = arith.constant 0 : index
      %40 = vector.load %arg6[%c0_26, %c0_27] : memref<1x32xf32, #tpu.memory_space<vmem>>, vector<1x32xf32>
      %41 = vector.broadcast %40 : vector<1x32xf32> to vector<8x32xf32>
      %42 = arith.mulf %39, %41 : vector<8x32xf32>
      %c0_28 = arith.constant 0 : index
      %c0_29 = arith.constant 0 : index
      %43 = vector.load %arg7[%c0_28, %c0_29] : memref<1x32xf32, #tpu.memory_space<vmem>>, vector<1x32xf32>
      %44 = vector.broadcast %43 : vector<1x32xf32> to vector<8x32xf32>
      %45 = arith.addf %42, %44 : vector<8x32xf32>
      %c0_30 = arith.constant 0 : index
      %c0_31 = arith.constant 0 : index
      %46 = vector.load %arg12[%c0_30, %c0_31] : memref<8x32xf32, #tpu.memory_space<vmem>>, vector<8x32xf32>
      tpu.vector_store %arg12[%c0_30, %c0_31], %45 {strides = array<i32>} : memref<8x32xf32, #tpu.memory_space<vmem>>, vector<8x32xf32>,
    } else {
    }
    %c0 = arith.constant 0 : index
    %c0_1 = arith.constant 0 : index
    %3 = vector.load %arg12[%c0, %c0_1] : memref<8x32xf32, #tpu.memory_space<vmem>>, vector<8x32xf32>
    %c0_2 = arith.constant 0 : index
    %c0_3 = arith.constant 0 : index
    %4 = vector.load %arg8[%c0_2, %c0_3] : memref<32x32xf32, #tpu.memory_space<vmem>>, vector<32x32xf32>
    %cst = arith.constant dense<0.000000e+00> : vector<8x32xf32>
    %5 = tpu.matmul %3, %4, %cst {dimension_numbers = #tpu.dot_dimension_numbers<[1], [0], [0], [1], [0, 0, 1, 1], [], []>} : vector<8x32xf32>, vector<32x32xf32>, vector<8x32xf32> -> vector<8x32xf32>
    %c0_4 = arith.constant 0 : index
    %c0_5 = arith.constant 0 : index
    %6 = vector.load %arg9[%c0_4, %c0_5] : memref<1x32xf32, #tpu.memory_space<vmem>>, vector<1x32xf32>
    %7 = vector.broadcast %6 : vector<1x32xf32> to vector<8x32xf32>
    %8 = arith.addf %5, %7 : vector<8x32xf32>
    %c0_6 = arith.constant 0 : index
    %c0_7 = arith.constant 0 : index
    %c0_8 = arith.constant 0 : index
    %9 = vector.load %arg10[%c0_6, %c0_7, %c0_8] : memref<1x8x32xf32, #tpu.memory_space<vmem>>, vector<1x8x32xf32>
    %10 = vector.shape_cast %9 : vector<1x8x32xf32> to vector<8x32xf32>
    %11 = vector.shape_cast %8 : vector<8x32xf32> to vector<1x8x32xf32>
    tpu.vector_store %arg10[%c0_6, %c0_7, %c0_8], %11 {strides = array<i32>} : memref<1x8x32xf32, #tpu.memory_space<vmem>>, vector<1x8x32xf32>,
    return
  }
  func.func @transform_0(%arg0: i32, %arg1: i32, %arg2: i32) -> (i32, i32, i32) {
    %c0_i32 = arith.constant 0 : i32
    %c0_i32_0 = arith.constant 0 : i32
    return %arg0, %arg1, %c0_i32 : i32, i32, i32
  }
  func.func @transform_1(%arg0: i32, %arg1: i32, %arg2: i32) -> (i32, i32, i32) {
    %c0_i32 = arith.constant 0 : i32
    %c0_i32_0 = arith.constant 0 : i32
    return %arg0, %arg1, %c0_i32 : i32, i32, i32
  }
  func.func @transform_2(%arg0: i32, %arg1: i32, %arg2: i32) -> (i32, i32, i32) {
    %c0_i32 = arith.constant 0 : i32
    %c0_i32_0 = arith.constant 0 : i32
    %c0_i32_1 = arith.constant 0 : i32
    return %arg0, %c0_i32, %c0_i32_0 : i32, i32, i32
  }
  func.func @transform_3(%arg0: i32, %arg1: i32, %arg2: i32) -> (i32, i32) {
    %c0_i32 = arith.constant 0 : i32
    %c0_i32_0 = arith.constant 0 : i32
    %c0_i32_1 = arith.constant 0 : i32
    return %c0_i32, %c0_i32_0 : i32, i32
  }
  func.func @transform_4(%arg0: i32, %arg1: i32, %arg2: i32) -> (i32, i32) {
    %c0_i32 = arith.constant 0 : i32
    %c0_i32_0 = arith.constant 0 : i32
    %c0_i32_1 = arith.constant 0 : i32
    return %c0_i32, %c0_i32_0 : i32, i32
  }
  func.func @transform_5(%arg0: i32, %arg1: i32, %arg2: i32) -> (i32, i32) {
    %c0_i32 = arith.constant 0 : i32
    %c0_i32_0 = arith.constant 0 : i32
    return %c0_i32, %arg2 : i32, i32
  }
  func.func @transform_6(%arg0: i32, %arg1: i32, %arg2: i32) -> (i32, i32) {
    %c0_i32 = arith.constant 0 : i32
    %c0_i32_0 = arith.constant 0 : i32
    return %c0_i32, %arg2 : i32, i32
  }
  func.func @transform_7(%arg0: i32, %arg1: i32, %arg2: i32) -> (i32, i32, i32) {
    %c0_i32 = arith.constant 0 : i32
    return %arg0, %arg1, %arg2 : i32, i32, i32
  }
  func.func @transform_8(%arg0: i32, %arg1: i32, %arg2: i32) -> (i32, i32, i32) {
    %c0_i32 = arith.constant 0 : i32
    %c0_i32_0 = arith.constant 0 : i32
    return %arg0, %arg1, %c0_i32 : i32, i32, i32
  }
}

</mosaic_0001>

<llo_original>
// kernel: tpu_custom_call.1
$region0: #{tpu_custom_call.1}
  #allocation0 [shape = 'u32[]', space=smem, size = 0x4, offset = 0x4, fixed_abs, tag = 'smem constant byte address 0x4 - core index']
  #allocation1 [shape = 'u32[144,128]{1,0:T(1,128)}', space=vmem, size = 0x12000, scoped, tag = 'internal scratch']
  #allocation2 [shape = 'f32[8,32]{1,0:T(8,128)}', space=vmem, size = 0x1000, scoped, tag = 'scratch operand']
  %s0 = inlined_call_operand.hbm [shape: f32[2,8,32], index: 0, kind: input, shape index: {}]
  %s1 = inlined_call_operand.hbm [shape: f32[2,8,32], index: 1, kind: input, shape index: {}]
  %s2 = inlined_call_operand.vmem [shape: f32[2,1,32], index: 2, kind: input, shape index: {}]
  %s3 = inlined_call_operand.vmem [shape: f32[1,32], index: 3, kind: input, shape index: {}]
  %s4 = inlined_call_operand.vmem [shape: f32[1,32], index: 4, kind: input, shape index: {}]
  %s5 = inlined_call_operand.hbm [shape: f32[32,32], index: 5, kind: input, shape index: {}]
  %s6 = inlined_call_operand.vmem [shape: f32[1,32], index: 6, kind: input, shape index: {}]
  %s7 = inlined_call_operand.hbm [shape: f32[2,8,32], index: 7, kind: output, shape index: {0}]
  %s8 = inlined_call_operand.hbm [shape: f32[2,8,32], index: 8, kind: output, shape index: {1}]
  %9 = xla_tuple %s7, %s8
  %s10 = sld [smem:[#allocation0]]
  $region85: #{tpu_custom_call.1} parent=0
    _
  %s12 = ssub.s32 1, %s10
  %s13 = scalar_select 0, %s12, %s10
  $region1: #{tpu_custom_call.1} parent=0
    #allocation3 [shape = 'u8[8192]{0}', space=vmem, size = 0x2000, scoped, tag = 'input window, operand 0']
    #allocation4 [shape = 's32[2]{0}', space=sflag, size = 0x8, scoped, tag = 'scoped memory for tpu_custom_call.1']
    #allocation5 [shape = 's32[2]{0}', space=sflag, size = 0x8, scoped, tag = 'scoped memory for tpu_custom_call.1']
    #allocation6 [shape = 'u8[8192]{0}', space=vmem, size = 0x2000, scoped, tag = 'input window, operand 1']
    #allocation7 [shape = 's32[2]{0}', space=sflag, size = 0x8, scoped, tag = 'scoped memory for tpu_custom_call.1']
    #allocation8 [shape = 'u8[16384]{0}', space=vmem, size = 0x4000, scoped, tag = 'input window, operand 5, single buffered']
    #allocation9 [shape = 'u8[8192]{0}', space=vmem, size = 0x2000, scoped, tag = 'output window, operand 0']
    #allocation10 [shape = 'u8[8192]{0}', space=vmem, size = 0x2000, scoped, tag = 'output window, operand 1']
    #allocation11 [shape = 's32[2]{0}', space=sflag, size = 0x8, scoped, tag = 'scoped memory for tpu_custom_call.1']
    %14 = vsyncpa [#allocation4], 0
    %s15 = scalar_lea.sflag [#allocation4], 1
    %16 = vsyncpa %s15, 0
    %17 = vsyncpa [#allocation7], 0
    %s18 = scalar_lea.sflag [#allocation7], 1
    %19 = vsyncpa %s18, 0
    %20 = vsyncpa [#allocation5], 0
    %s21 = scalar_lea.sflag [#allocation5], 1
    %22 = vsyncpa %s21, 0
    %23 = vsyncpa [#allocation11], 0
    %s24 = scalar_lea.sflag [#allocation11], 1
    %25 = vsyncpa %s24, 0
    loop: start=0, step=1, limit=4
    $region2: #{tpu_custom_call.1} parent=1 // loop_pre_header
      _
    $region3: #{tpu_custom_call.1} parent=1 // loop_header
      %s27 = sphi 0, %s31
      %p28 = scmp.ge.s32.totalorder %s27, 4
      %s34 = sphi 0, %s53
      %s35 = sphi 0, %s49
      %s36 = sphi 0, %s45
      %s37 = sphi 0, %s34
      %s38 = sphi 0, %s35
      %s39 = sphi 0, %s36
      %s40 = sphi 0, %s37
      %s41 = sphi 0, %s38
      %s42 = sphi 0, %s39
      %s58 = sphi 0, %s60
      %s61 = sphi 0, %s58
      %s62 = sphi 0, %s61
      %s78 = sphi 0, %s62
      %s86 = sphi 0, %s88
      %s89 = sphi 0, %s86
      %s90 = sphi 0, %s89
      %s106 = sphi 0, %s90
      %s112 = sphi 0, %s114
      %s115 = sphi 0, %s112
      %s116 = sphi 0, %s115
      %s132 = sphi 0, %s116
      %s136 = sphi 0, %s136
      %s138 = sphi 0, %s136
      %s139 = sphi 0, %s138
      %s153 = sphi 0, %s139
      %s157 = sphi 0, %s157
      %s159 = sphi 0, %s157
      %s160 = sphi 0, %s159
      %s174 = sphi 0, %s160
      %s180 = sphi 0, %s182
      %s183 = sphi 0, %s180
      %s184 = sphi 0, %s183
      %s200 = sphi 0, %s184
      %s206 = sphi 0, %s208
      %s209 = sphi 0, %s206
      %s210 = sphi 0, %s209
      %s226 = sphi 0, %s210
      %s236 = sphi 0, %s238
      %s239 = sphi 0, %s236
      %s240 = sphi 0, %s239
      %s256 = sphi 0, %s240
      %s264 = sphi 0, %s266
      %s267 = sphi 0, %s264
      %s268 = sphi 0, %s267
      %s284 = sphi 0, %s268
    $region4: #{tpu_custom_call.1} parent=1 // loop_header_branch
      %30 = sbr.rel (%p28) target = $region8
    $region5: #{tpu_custom_call.1} parent=1 // loop_body
      %s32 = ssub.s32 %s27, 1
      %s33 = ssub.s32 %s27, 2
      %s43 = sadd.s32 1, %s36
      %p44 = scmp.ge.s32.totalorder %s43, 1
      %s45 = scalar_select %p44, 0, %s43
      %s46 = sadd.s32 1, %s35
      %s47 = scalar_select %p44, %s46, %s35
      %p48 = scmp.ge.s32.totalorder %s47, 1
      %s49 = scalar_select %p48, 0, %s47
      %s50 = sadd.s32 1, %s34
      %s51 = scalar_select %p48, %s50, %s34
      %p52 = scmp.ge.s32.totalorder %s51, 2
      %s53 = scalar_select %p52, 0, %s51
      %s54 = ssub.s32 %s34, %s53
      %s55 = ssub.s32 %s35, %s49
      %s56 = sor.u32 %s54, %s55
      %p57 = scmp.eq.s32.totalorder %s56, 0
      %s59 = sadd.s32 %s58, 1
      %s60 = scalar_select %p57, %s58, %s59
      %p63 = pneg %p57
      %p64 = scmp.eq.s32.totalorder %s27, 1
      %p65 = por %p63, %p64
      %p66 = scmp.ne.s32.totalorder %s58, %s61
      %p67 = scmp.eq.s32.totalorder %s27, 0
      %p68 = por %p66, %p67
      %p69 = scmp.ne.s32.totalorder %s58, %s61
      %p70 = scmp.eq.s32.totalorder %s32, 1
      %p71 = por %p69, %p70
      %p72 = scmp.ne.s32.totalorder %s61, %s62
      %p73 = scmp.eq.s32.totalorder %s32, 0
      %p74 = por %p72, %p73
      %p75 = scmp.ne.s32.totalorder %s61, %s62
      %p76 = scmp.eq.s32.totalorder %s33, 1
      %p77 = por %p75, %p76
      %p79 = scmp.ne.s32.totalorder %s62, %s78
      %p80 = scmp.eq.s32.totalorder %s33, 0
      %p81 = por %p79, %p80
      %s82 = ssub.s32 %s34, %s53
      %s83 = ssub.s32 %s35, %s49
      %s84 = sor.u32 %s82, %s83
      %p85 = scmp.eq.s32.totalorder %s84, 0
      %s87 = sadd.s32 %s86, 1
      %s88 = scalar_select %p85, %s86, %s87
      %p91 = pneg %p85
      %p92 = scmp.eq.s32.totalorder %s27, 1
      %p93 = por %p91, %p92
      %p94 = scmp.ne.s32.totalorder %s86, %s89
      %p95 = scmp.eq.s32.totalorder %s27, 0
      %p96 = por %p94, %p95
      %p97 = scmp.ne.s32.totalorder %s86, %s89
      %p98 = scmp.eq.s32.totalorder %s32, 1
      %p99 = por %p97, %p98
      %p100 = scmp.ne.s32.totalorder %s89, %s90
      %p101 = scmp.eq.s32.totalorder %s32, 0
      %p102 = por %p100, %p101
      %p103 = scmp.ne.s32.totalorder %s89, %s90
      %p104 = scmp.eq.s32.totalorder %s33, 1
      %p105 = por %p103, %p104
      %p107 = scmp.ne.s32.totalorder %s90, %s106
      %p108 = scmp.eq.s32.totalorder %s33, 0
      %p109 = por %p107, %p108
      %s110 = ssub.s32 %s34, %s53
      %p111 = scmp.eq.s32.totalorder %s110, 0
      %s113 = sadd.s32 %s112, 1
      %s114 = scalar_select %p111, %s112, %s113
      %p117 = pneg %p111
      %p118 = scmp.eq.s32.totalorder %s27, 1
      %p119 = por %p117, %p118
      %p120 = scmp.ne.s32.totalorder %s112, %s115
      %p121 = scmp.eq.s32.totalorder %s27, 0
      %p122 = por %p120, %p121
      %p123 = scmp.ne.s32.totalorder %s112, %s115
      %p124 = scmp.eq.s32.totalorder %s32, 1
      %p125 = por %p123, %p124
      %p126 = scmp.ne.s32.totalorder %s115, %s116
      %p127 = scmp.eq.s32.totalorder %s32, 0
      %p128 = por %p126, %p127
      %p129 = scmp.ne.s32.totalorder %s115, %s116
      %p130 = scmp.eq.s32.totalorder %s33, 1
      %p131 = por %p129, %p130
      %p133 = scmp.ne.s32.totalorder %s116, %s132
      %p134 = scmp.eq.s32.totalorder %s33, 0
      %p135 = por %p133, %p134
      %s137 = sadd.s32 %s136, 1
      %p140 = scmp.eq.s32.totalorder %s27, 1
      %p141 = scmp.ne.s32.totalorder %s136, %s138
      %p142 = scmp.eq.s32.totalorder %s27, 0
      %p143 = por %p141, %p142
      %p144 = scmp.ne.s32.totalorder %s136, %s138
      %p145 = scmp.eq.s32.totalorder %s32, 1
      %p146 = por %p144, %p145
      %p147 = scmp.ne.s32.totalorder %s138, %s139
      %p148 = scmp.eq.s32.totalorder %s32, 0
      %p149 = por %p147, %p148
      %p150 = scmp.ne.s32.totalorder %s138, %s139
      %p151 = scmp.eq.s32.totalorder %s33, 1
      %p152 = por %p150, %p151
      %p154 = scmp.ne.s32.totalorder %s139, %s153
      %p155 = scmp.eq.s32.totalorder %s33, 0
      %p156 = por %p154, %p155
      %s158 = sadd.s32 %s157, 1
      %p161 = scmp.eq.s32.totalorder %s27, 1
      %p162 = scmp.ne.s32.totalorder %s157, %s159
      %p163 = scmp.eq.s32.totalorder %s27, 0
      %p164 = por %p162, %p163
      %p165 = scmp.ne.s32.totalorder %s157, %s159
      %p166 = scmp.eq.s32.totalorder %s32, 1
      %p167 = por %p165, %p166
      %p168 = scmp.ne.s32.totalorder %s159, %s160
      %p169 = scmp.eq.s32.totalorder %s32, 0
      %p170 = por %p168, %p169
      %p171 = scmp.ne.s32.totalorder %s159, %s160
      %p172 = scmp.eq.s32.totalorder %s33, 1
      %p173 = por %p171, %p172
      %p175 = scmp.ne.s32.totalorder %s160, %s174
      %p176 = scmp.eq.s32.totalorder %s33, 0
      %p177 = por %p175, %p176
      %s178 = ssub.s32 %s36, %s45
      %p179 = scmp.eq.s32.totalorder %s178, 0
      %s181 = sadd.s32 %s180, 1
      %s182 = scalar_select %p179, %s180, %s181
      %p185 = pneg %p179
      %p186 = scmp.eq.s32.totalorder %s27, 1
      %p187 = por %p185, %p186
      %p188 = scmp.ne.s32.totalorder %s180, %s183
      %p189 = scmp.eq.s32.totalorder %s27, 0
      %p190 = por %p188, %p189
      %p191 = scmp.ne.s32.totalorder %s180, %s183
      %p192 = scmp.eq.s32.totalorder %s32, 1
      %p193 = por %p191, %p192
      %p194 = scmp.ne.s32.totalorder %s183, %s184
      %p195 = scmp.eq.s32.totalorder %s32, 0
      %p196 = por %p194, %p195
      %p197 = scmp.ne.s32.totalorder %s183, %s184
      %p198 = scmp.eq.s32.totalorder %s33, 1
      %p199 = por %p197, %p198
      %p201 = scmp.ne.s32.totalorder %s184, %s200
      %p202 = scmp.eq.s32.totalorder %s33, 0
      %p203 = por %p201, %p202
      %s204 = ssub.s32 %s36, %s45
      %p205 = scmp.eq.s32.totalorder %s204, 0
      %s207 = sadd.s32 %s206, 1
      %s208 = scalar_select %p205, %s206, %s207
      %p211 = pneg %p205
      %p212 = scmp.eq.s32.totalorder %s27, 1
      %p213 = por %p211, %p212
      %p214 = scmp.ne.s32.totalorder %s206, %s209
      %p215 = scmp.eq.s32.totalorder %s27, 0
      %p216 = por %p214, %p215
      %p217 = scmp.ne.s32.totalorder %s206, %s209
      %p218 = scmp.eq.s32.totalorder %s32, 1
      %p219 = por %p217, %p218
      %p220 = scmp.ne.s32.totalorder %s209, %s210
      %p221 = scmp.eq.s32.totalorder %s32, 0
      %p222 = por %p220, %p221
      %p223 = scmp.ne.s32.totalorder %s209, %s210
      %p224 = scmp.eq.s32.totalorder %s33, 1
      %p225 = por %p223, %p224
      %p227 = scmp.ne.s32.totalorder %s210, %s226
      %p228 = scmp.eq.s32.totalorder %s33, 0
      %p229 = por %p227, %p228
      %s230 = ssub.s32 %s34, %s53
      %s231 = ssub.s32 %s35, %s49
      %s232 = sor.u32 %s230, %s231
      %s233 = ssub.s32 %s36, %s45
      %s234 = sor.u32 %s232, %s233
      %p235 = scmp.eq.s32.totalorder %s234, 0
      %s237 = sadd.s32 %s236, 1
      %s238 = scalar_select %p235, %s236, %s237
      %p241 = pneg %p235
      %p242 = scmp.eq.s32.totalorder %s27, 1
      %p243 = por %p241, %p242
      %p244 = scmp.ne.s32.totalorder %s236, %s239
      %p245 = scmp.eq.s32.totalorder %s27, 0
      %p246 = por %p244, %p245
      %p247 = scmp.ne.s32.totalorder %s236, %s239
      %p248 = scmp.eq.s32.totalorder %s32, 1
      %p249 = por %p247, %p248
      %p250 = scmp.ne.s32.totalorder %s239, %s240
      %p251 = scmp.eq.s32.totalorder %s32, 0
      %p252 = por %p250, %p251
      %p253 = scmp.ne.s32.totalorder %s239, %s240
      %p254 = scmp.eq.s32.totalorder %s33, 1
      %p255 = por %p253, %p254
      %p257 = scmp.ne.s32.totalorder %s240, %s256
      %p258 = scmp.eq.s32.totalorder %s33, 0
      %p259 = por %p257, %p258
      %s260 = ssub.s32 %s34, %s53
      %s261 = ssub.s32 %s35, %s49
      %s262 = sor.u32 %s260, %s261
      %p263 = scmp.eq.s32.totalorder %s262, 0
      %s265 = sadd.s32 %s264, 1
      %s266 = scalar_select %p263, %s264, %s265
      %p269 = pneg %p263
      %p270 = scmp.eq.s32.totalorder %s27, 1
      %p271 = por %p269, %p270
      %p272 = scmp.ne.s32.totalorder %s264, %s267
      %p273 = scmp.eq.s32.totalorder %s27, 0
      %p274 = por %p272, %p273
      %p275 = scmp.ne.s32.totalorder %s264, %s267
      %p276 = scmp.eq.s32.totalorder %s32, 1
      %p277 = por %p275, %p276
      %p278 = scmp.ne.s32.totalorder %s267, %s268
      %p279 = scmp.eq.s32.totalorder %s32, 0
      %p280 = por %p278, %p279
      %p281 = scmp.ne.s32.totalorder %s267, %s268
      %p282 = scmp.eq.s32.totalorder %s33, 1
      %p283 = por %p281, %p282
      %p285 = scmp.ne.s32.totalorder %s268, %s284
      %p286 = scmp.eq.s32.totalorder %s33, 0
      %p287 = por %p285, %p286
      %p288 = scmp.le.s32.totalorder 1, %s27
      %p289 = scmp.lt.s32.totalorder %s27, 3
      %p290 = pnand %p288, %p289
      %p291 = pneg %p290
      // Predicated region
      $region9: #{tpu_custom_call.1} parent=5 // pred_check
        _
      $region10: #{tpu_custom_call.1} parent=5 // pred_check_branch
        %293 = sbr.rel (%p290) target = $region12
      $region11: #{tpu_custom_call.1} parent=5 // pred_region
        %s294 = ssub.s32 %s27, 1
        // Predicated region
        $region13: #{tpu_custom_call.1} parent=11 // pred_check
          %p295 = pneg %p149
        $region14: #{tpu_custom_call.1} parent=11 // pred_check_branch
          %297 = sbr.rel (%p295) target = $region16
        $region15: #{tpu_custom_call.1} parent=11 // pred_region
          _
        $region16: #{tpu_custom_call.1} parent=11 // pred_fallthru
          _
        // Predicated region
        $region17: #{tpu_custom_call.1} parent=11 // pred_check
          %p298 = pneg %p170
        $region18: #{tpu_custom_call.1} parent=11 // pred_check_branch
          %300 = sbr.rel (%p298) target = $region20
        $region19: #{tpu_custom_call.1} parent=11 // pred_region
          _
        $region20: #{tpu_custom_call.1} parent=11 // pred_fallthru
          _
        // Predicated region
        $region21: #{tpu_custom_call.1} parent=11 // pred_check
          %p301 = pneg %p196
        $region22: #{tpu_custom_call.1} parent=11 // pred_check_branch
          %303 = sbr.rel (%p301) target = $region24
        $region23: #{tpu_custom_call.1} parent=11 // pred_region
          %s305 = ssub.s32 512, 512
          %306 = vsyncadd [#allocation7], %s305
          %s307 = smul.addr %s39, 128
          %s308 = scalar_lea.hbm %s5, %s307
          %s309 = sshll.u32 [#allocation8], 4
          %s310 = int_to_ptr.vmem [resolvable:$true] %s309
          %315 = dma.hbm_to_vmem [thread:$0]  %s308, 512, %s310, [#allocation7], 128, 128, 8
        $region24: #{tpu_custom_call.1} parent=11 // pred_fallthru
          _
        // Predicated region
        $region25: #{tpu_custom_call.1} parent=11 // pred_check
          %p316 = pneg %p222
        $region26: #{tpu_custom_call.1} parent=11 // pred_check_branch
          %318 = sbr.rel (%p316) target = $region28
        $region27: #{tpu_custom_call.1} parent=11 // pred_region
          %p319 = scmp.lt.s32.totalorder %s39, 0
          %s320 = scalar_select %p319, %s39, 0
          %s321 = scalar_lea.vmem %s6, %s320
        $region28: #{tpu_custom_call.1} parent=11 // pred_fallthru
          _
      $region12: #{tpu_custom_call.1} parent=5 // pred_fallthru
        _
      %p322 = scmp.lt.s32.totalorder %s27, 2
      // Predicated region
      $region29: #{tpu_custom_call.1} parent=5 // pred_check
        %p323 = pneg %p322
      $region30: #{tpu_custom_call.1} parent=5 // pred_check_branch
        %325 = sbr.rel (%p323) target = $region32
      $region31: #{tpu_custom_call.1} parent=5 // pred_region
        // Predicated region
        $region33: #{tpu_custom_call.1} parent=31 // pred_check
          %p326 = pneg %p68
        $region34: #{tpu_custom_call.1} parent=31 // pred_check_branch
          %328 = sbr.rel (%p326) target = $region36
        $region35: #{tpu_custom_call.1} parent=31 // pred_region
          %s329 = sand.u32 %s58, 1
          %s330 = scalar_lea.sflag [#allocation4], %s329
          %s331 = sand.u32 %s58, 1
          %s332 = smul.addr %s331, 8
          %s333 = scalar_lea.vmem [#allocation3], %s332
          %s335 = ssub.s32 128, 128
          %336 = vsyncadd %s330, %s335
          %s337 = sadd.s32 %s35, %s34
          %s338 = smul.addr %s337, 128
          %s339 = scalar_lea.hbm %s0, %s338
          %s341 = sshll.u32 %s333, 4
          %s342 = int_to_ptr.vmem [resolvable:$true] %s341
          %344 = dma.hbm_to_vmem [thread:$0]  %s339, 128, %s342, %s330
        $region36: #{tpu_custom_call.1} parent=31 // pred_fallthru
          _
        // Predicated region
        $region37: #{tpu_custom_call.1} parent=31 // pred_check
          %p345 = pneg %p96
        $region38: #{tpu_custom_call.1} parent=31 // pred_check_branch
          %347 = sbr.rel (%p345) target = $region40
        $region39: #{tpu_custom_call.1} parent=31 // pred_region
          %s348 = sand.u32 %s27, 1
          %s349 = scalar_lea.sflag [#allocation7], %s348
          %s350 = sand.u32 %s86, 1
          %s351 = smul.addr %s350, 8
          %s352 = scalar_lea.vmem [#allocation6], %s351
          %s354 = ssub.s32 128, 128
          %355 = vsyncadd %s349, %s354
          %s356 = sadd.s32 %s35, %s34
          %s357 = smul.addr %s356, 128
          %s358 = scalar_lea.hbm %s1, %s357
          %s360 = sshll.u32 %s352, 4
          %s361 = int_to_ptr.vmem [resolvable:$true] %s360
          %363 = dma.hbm_to_vmem [thread:$0]  %s358, 128, %s361, %s349
        $region40: #{tpu_custom_call.1} parent=31 // pred_fallthru
          _
        // Predicated region
        $region41: #{tpu_custom_call.1} parent=31 // pred_check
          %p364 = pneg %p122
        $region42: #{tpu_custom_call.1} parent=31 // pred_check_branch
          %366 = sbr.rel (%p364) target = $region44
        $region43: #{tpu_custom_call.1} parent=31 // pred_region
          %p367 = scmp.lt.s32.totalorder %s34, 1
          %s368 = scalar_select %p367, %s34, 1
          %s369 = scalar_lea.vmem %s2, %s368
        $region44: #{tpu_custom_call.1} parent=31 // pred_fallthru
          _
      $region32: #{tpu_custom_call.1} parent=5 // pred_fallthru
        _
      %p370 = scmp.le.s32.totalorder 1, %s27
      %p371 = scmp.lt.s32.totalorder %s27, 3
      %p372 = pnand %p370, %p371
      %p373 = pneg %p372
      // Predicated region
      $region45: #{tpu_custom_call.1} parent=5 // pred_check
        _
      $region46: #{tpu_custom_call.1} parent=5 // pred_check_branch
        %375 = sbr.rel (%p372) target = $region48
      $region47: #{tpu_custom_call.1} parent=5 // pred_region
        %s376 = ssub.s32 %s27, 1
        %s377 = sand.u32 %s61, 1
        %s378 = scalar_lea.sflag [#allocation4], %s377
        %s379 = sand.u32 %s61, 1
        %s380 = smul.addr %s379, 8
        %s381 = scalar_lea.vmem [#allocation3], %s380
        // Predicated region
        $region49: #{tpu_custom_call.1} parent=47 // pred_check
          %p382 = pneg %p74
        $region50: #{tpu_custom_call.1} parent=47 // pred_check_branch
          %384 = sbr.rel (%p382) target = $region52
        $region51: #{tpu_custom_call.1} parent=47 // pred_region
          %385 = dma.done %s378, 128
        $region52: #{tpu_custom_call.1} parent=47 // pred_fallthru
          _
        %s386 = sand.u32 %s32, 1
        %s387 = scalar_lea.sflag [#allocation7], %s386
        %s388 = sand.u32 %s89, 1
        %s389 = smul.addr %s388, 8
        %s390 = scalar_lea.vmem [#allocation6], %s389
        // Predicated region
        $region53: #{tpu_custom_call.1} parent=47 // pred_check
          %p391 = pneg %p102
        $region54: #{tpu_custom_call.1} parent=47 // pred_check_branch
          %393 = sbr.rel (%p391) target = $region56
        $region55: #{tpu_custom_call.1} parent=47 // pred_region
          %394 = dma.done %s387, 128
        $region56: #{tpu_custom_call.1} parent=47 // pred_fallthru
          _
        // Predicated region
        $region57: #{tpu_custom_call.1} parent=47 // pred_check
          %p395 = pneg %p196
        $region58: #{tpu_custom_call.1} parent=47 // pred_check_branch
          %397 = sbr.rel (%p395) target = $region60
        $region59: #{tpu_custom_call.1} parent=47 // pred_region
          %398 = dma.done [#allocation7], 512
        $region60: #{tpu_custom_call.1} parent=47 // pred_fallthru
          _
        %s399 = sand.u32 %s61, 1
        %s400 = scalar_lea.sflag [#allocation4], %s399
        %s401 = sand.u32 %s61, 1
        %s402 = smul.addr %s401, 8
        %s403 = scalar_lea.vmem [#allocation3], %s402
        %p404 = pneg %p74
        %p405 = pneg %p71
        %s406 = sand.u32 %s32, 1
        %s407 = scalar_lea.sflag [#allocation7], %s406
        %s408 = sand.u32 %s89, 1
        %s409 = smul.addr %s408, 8
        %s410 = scalar_lea.vmem [#allocation6], %s409
        %p411 = pneg %p102
        %p412 = pneg %p99
        %p413 = scmp.lt.s32.totalorder %s37, 1
        %s414 = scalar_select %p413, %s37, 1
        %s415 = scalar_lea.vmem %s2, %s414
        %p416 = pneg %p128
        %p417 = pneg %p125
        %p418 = pneg %p149
        %p419 = pneg %p146
        %p420 = pneg %p170
        %p421 = pneg %p167
        %p422 = pneg %p196
        %p423 = pneg %p193
        %p424 = scmp.lt.s32.totalorder %s39, 0
        %s425 = scalar_select %p424, %s39, 0
        %s426 = scalar_lea.vmem %s6, %s425
        %p427 = pneg %p222
        %p428 = pneg %p219
        %p429 = pneg %p252
        %p430 = pneg %p249
        %s431 = sand.u32 %s239, 1
        %s432 = scalar_lea.sflag [#allocation5], %s431
        %s433 = sand.u32 %s239, 1
        %s434 = smul.addr %s433, 8
        %s435 = scalar_lea.vmem [#allocation9], %s434
        %p436 = pneg %p280
        %p437 = pneg %p277
        %s438 = sand.u32 %s267, 1
        %s439 = scalar_lea.sflag [#allocation11], %s438
        %s440 = sand.u32 %s267, 1
        %s441 = smul.addr %s440, 8
        %s442 = scalar_lea.vmem [#allocation10], %s441
        %p443 = scmp.lt.s32.totalorder %s37, 1
        %s444 = scalar_select %p443, %s37, 1
        %s445 = scalar_lea.vmem %s2, %s444
        %p446 = scmp.lt.s32.totalorder %s39, 0
        %s447 = scalar_select %p446, %s39, 0
        %s448 = scalar_lea.vmem %s6, %s447
        %p449 = scmp.eq.s32.totalorder %s39, 0
        // Predicated region
        $region61: #{tpu_custom_call.1} parent=47 // pred_check
          %p450 = pneg %p449
        $region62: #{tpu_custom_call.1} parent=47 // pred_check_branch
          %452 = sbr.rel (%p450) target = $region64
        $region63: #{tpu_custom_call.1} parent=47 // pred_region
          %v453 = vld [vmem:[%s381] sm:$0xff]
          %v454 = vld [vmem:[%s390] sm:$0xff]
          %v455 = vadd.f32 %v453, %v454
          %v456 = vld [vmem:[%s445] sm:$0x1]
          %v458 = vlaneseq
          %v459 = vshrl.u32 %v458, 7
          %v460 = vsub.s32 0, %v459
          %v461 = vrot.slane %v456, %v460
          %v463 = vadd.f32 %v455, %v461
          %vm464 = vcmask 261120
          %465 = vst.msk [vmem:[%s442] sm:$0xff] %vm464, %v463
          %v466 = vsel %vm464, %v463, 0.0
          %467 = vadd.xlane.f32.xlu0 %v466
          %v468 = vpop.xlane.xlu0 %467
          %v469 = vrcp.pop 32.0
          %v470 = vmul.f32 %v468, %v469
          %v471 = vsub.f32 %v463, %v470
          %v472 = vmul.f32 %v471, %v471
          %v473 = vsel %vm464, %v472, 0.0
          %474 = vadd.xlane.f32.xlu0 %v473
          %v475 = vpop.xlane.xlu0 %474
          %v476 = vmul.f32 %v475, %v469
          %v477 = vadd.f32 %v476, 1e-05
          %v478 = vrsqrt.pop %v477
          %v479 = vmul.f32 %v471, %v478
          %v480 = vld [vmem:[%s3] sm:$0x1]
          %v482 = vlaneseq
          %v483 = vshrl.u32 %v482, 7
          %v484 = vsub.s32 0, %v483
          %v485 = vrot.slane %v480, %v484
          %v487 = vmul.f32 %v479, %v485
          %v488 = vld [vmem:[%s4] sm:$0x1]
          %v490 = vlaneseq
          %v491 = vshrl.u32 %v490, 7
          %v492 = vsub.s32 0, %v491
          %v493 = vrot.slane %v488, %v492
          %v495 = vadd.f32 %v487, %v493
          %496 = vst.msk [vmem:[#allocation2] sm:$0xff] %vm464, %v495
        $region64: #{tpu_custom_call.1} parent=47 // pred_fallthru
          _
        %v497 = vld [vmem:[#allocation2] sm:$0xff]
        %v498 = vld [vmem:[#allocation8] sm:$0xff]
        %v499 = vld [vmem:[#allocation8 + $0x8] sm:$0xff]
        %v500 = vld [vmem:[#allocation8 + $0x10] sm:$0xff]
        %v501 = vld [vmem:[#allocation8 + $0x18] sm:$0xff]
        %v502 = vld [vmem:[%s448] sm:$0x1]
        %v504 = vlaneseq
        %v505 = vshrl.u32 %v504, 7
        %v506 = vsub.s32 0, %v505
        %v507 = vrot.slane %v502, %v506
        %vm509 = vcmask 261120
        %v511 = vsel %vm509, %v497, 0
        %513 = vmatprep.subr.mxu0 0.0
        %514 = vmatpush1.msra.mxu0 %v498
        %515 = vmatprep.subr.mxu0 0.0
        %516 = vmatpush1.msra.mxu0 %v499
        %517 = vmatprep.subr.mxu0 0.0
        %518 = vmatpush1.msra.mxu0 %v500
        %519 = vmatprep.subr.mxu0 0.0
        %520 = vmatpush1.msra.mxu0 %v501
        %521 = vmatprep.subr.mxu0 0.0
        %522 = vmatpush1.msra.mxu0 0.0
        %523 = vmatprep.subr.mxu0 0.0
        %524 = vmatpush1.msra.mxu0 0.0
        %525 = vmatprep.subr.mxu0 0.0
        %526 = vmatpush1.msra.mxu0 0.0
        %527 = vmatprep.subr.mxu0 0.0
        %528 = vmatpush1.msra.mxu0 0.0
        %529 = vmatprep.subr.mxu0 0.0
        %530 = vmatpush1.msra.mxu0 0.0
        %531 = vmatprep.subr.mxu0 0.0
        %532 = vmatpush1.msra.mxu0 0.0
        %533 = vmatprep.subr.mxu0 0.0
        %534 = vmatpush1.msra.mxu0 0.0
        %535 = vmatprep.subr.mxu0 0.0
        %536 = vmatpush1.msra.mxu0 0.0
        %537 = vmatprep.subr.mxu0 0.0
        %538 = vmatpush1.msra.mxu0 0.0
        %539 = vmatprep.subr.mxu0 0.0
        %540 = vmatpush1.msra.mxu0 0.0
        %541 = vmatprep.subr.mxu0 0.0
        %542 = vmatpush1.msra.mxu0 0.0
        %543 = vmatprep.subr.mxu0 0.0
        %544 = vmatpush1.msra.mxu0 0.0
        %545 = vmatprep.subr.mxu0 0.0
        %546 = vmatpush1.msra.mxu0 0.0
        %547 = vmatprep.subr.mxu0 0.0
        %548 = vmatpush1.msra.mxu0 0.0
        %549 = vmatprep.subr.mxu0 0.0
        %550 = vmatpush1.msra.mxu0 0.0
        %551 = vmatprep.subr.mxu0 0.0
        %552 = vmatpush1.msra.mxu0 0.0
        %553 = vmatprep.subr.mxu0 0.0
        %554 = vmatpush1.msra.mxu0 0.0
        %555 = vmatprep.subr.mxu0 0.0
        %556 = vmatpush1.msra.mxu0 0.0
        %557 = vmatprep.subr.mxu0 0.0
        %558 = vmatpush1.msra.mxu0 0.0
        %559 = vmatprep.subr.mxu0 0.0
        %560 = vmatpush1.msra.mxu0 0.0
        %561 = vmatprep.subr.mxu0 0.0
        %562 = vmatpush1.msra.mxu0 0.0
        %563 = vmatprep.subr.mxu0 0.0
        %564 = vmatpush1.msra.mxu0 0.0
        %565 = vmatprep.subr.mxu0 0.0
        %566 = vmatpush1.msra.mxu0 0.0
        %567 = vmatprep.subr.mxu0 0.0
        %568 = vmatpush1.msra.mxu0 0.0
        %569 = vmatprep.subr.mxu0 0.0
        %570 = vmatpush1.msra.mxu0 0.0
        %571 = vmatprep.subr.mxu0 0.0
        %572 = vmatpush1.msra.mxu0 0.0
        %573 = vmatprep.subr.mxu0 0.0
        %574 = vmatpush1.msra.mxu0 0.0
        %575 = vmatprep.subr.mxu0 0.0
        %576 = vmatpush1.msra.mxu0 0.0
        %577 = vmatprep.mubr.f32.mxu0 0.0
        %578 = vmatmul.mubr.f32.gmra.mrb[0].mxu0 %v511
        %v579 = vpop.f32.mrb[0].mxu0
        %v580 = vadd.f32 %v507, %v579
        %v581 = vpop.f32.mrb[0].mxu0
        %582 = vdwg.mxu0
        %583 = vst.msk [vmem:[%s435] sm:$0xff] %vm509, %v580
        %s584 = sand.u32 %s239, 1
        %s585 = scalar_lea.sflag [#allocation5], %s584
        %s586 = sand.u32 %s239, 1
        %s587 = smul.addr %s586, 8
        %s588 = scalar_lea.vmem [#allocation9], %s587
        %s589 = sand.u32 %s267, 1
        %s590 = scalar_lea.sflag [#allocation11], %s589
        %s591 = sand.u32 %s267, 1
        %s592 = smul.addr %s591, 8
        %s593 = scalar_lea.vmem [#allocation10], %s592
        // Predicated region
        $region65: #{tpu_custom_call.1} parent=47 // pred_check
          %p594 = pneg %p249
        $region66: #{tpu_custom_call.1} parent=47 // pred_check_branch
          %596 = sbr.rel (%p594) target = $region68
        $region67: #{tpu_custom_call.1} parent=47 // pred_region
          %s598 = ssub.s32 128, 128
          %599 = vsyncadd %s585, %s598
          %s600 = sadd.s32 %s39, %s38
          %s601 = sadd.s32 %s600, %s37
          %s602 = smul.addr %s601, 128
          %s603 = scalar_lea.hbm %s7, %s602
          %s605 = sshll.u32 %s588, 4
          %s606 = int_to_ptr.vmem [resolvable:$true] %s605
          %608 = dma.vmem_to_hbm [thread:$0]  %s606, 128, %s603, %s585
        $region68: #{tpu_custom_call.1} parent=47 // pred_fallthru
          _
        // Predicated region
        $region69: #{tpu_custom_call.1} parent=47 // pred_check
          %p609 = pneg %p277
        $region70: #{tpu_custom_call.1} parent=47 // pred_check_branch
          %611 = sbr.rel (%p609) target = $region72
        $region71: #{tpu_custom_call.1} parent=47 // pred_region
          %s613 = ssub.s32 128, 128
          %614 = vsyncadd %s590, %s613
          %s615 = sadd.s32 %s38, %s37
          %s616 = smul.addr %s615, 128
          %s617 = scalar_lea.hbm %s8, %s616
          %s619 = sshll.u32 %s593, 4
          %s620 = int_to_ptr.vmem [resolvable:$true] %s619
          %622 = dma.vmem_to_hbm [thread:$0]  %s620, 128, %s617, %s590
        $region72: #{tpu_custom_call.1} parent=47 // pred_fallthru
          _
      $region48: #{tpu_custom_call.1} parent=5 // pred_fallthru
        _
      %p623 = scmp.le.s32.totalorder 2, %s27
      // Predicated region
      $region73: #{tpu_custom_call.1} parent=5 // pred_check
        %p624 = pneg %p623
      $region74: #{tpu_custom_call.1} parent=5 // pred_check_branch
        %626 = sbr.rel (%p624) target = $region76
      $region75: #{tpu_custom_call.1} parent=5 // pred_region
        %s627 = ssub.s32 %s27, 2
        // Predicated region
        $region77: #{tpu_custom_call.1} parent=75 // pred_check
          %p628 = pneg %p255
        $region78: #{tpu_custom_call.1} parent=75 // pred_check_branch
          %630 = sbr.rel (%p628) target = $region80
        $region79: #{tpu_custom_call.1} parent=75 // pred_region
          %s631 = sand.u32 %s240, 1
          %s632 = scalar_lea.sflag [#allocation5], %s631
          %s633 = sand.u32 %s240, 1
          %s634 = smul.addr %s633, 8
          %s635 = scalar_lea.vmem [#allocation9], %s634
          %636 = dma.done %s632, 128
        $region80: #{tpu_custom_call.1} parent=75 // pred_fallthru
          _
        // Predicated region
        $region81: #{tpu_custom_call.1} parent=75 // pred_check
          %p637 = pneg %p283
        $region82: #{tpu_custom_call.1} parent=75 // pred_check_branch
          %639 = sbr.rel (%p637) target = $region84
        $region83: #{tpu_custom_call.1} parent=75 // pred_region
          %s640 = sand.u32 %s268, 1
          %s641 = scalar_lea.sflag [#allocation11], %s640
          %s642 = sand.u32 %s268, 1
          %s643 = smul.addr %s642, 8
          %s644 = scalar_lea.vmem [#allocation10], %s643
          %645 = dma.done %s641, 128
        $region84: #{tpu_custom_call.1} parent=75 // pred_fallthru
          _
      $region76: #{tpu_custom_call.1} parent=5 // pred_fallthru
        _
    $region6: #{tpu_custom_call.1} parent=1 // loop_footer
      %s31 = sadd.s32 1, %s27
    $region7: #{tpu_custom_call.1} parent=1 // loop_footer_branch
      %26 = sbr.rel target = $region3
    $region8: #{tpu_custom_call.1} parent=1 // loop_exit
      _
    %646 = vsyncpa [#allocation4], 1
    %s647 = scalar_lea.sflag [#allocation4], 1
    %648 = vsyncpa %s647, 1
    %649 = vsyncpa [#allocation7], 1
    %s650 = scalar_lea.sflag [#allocation7], 1
    %651 = vsyncpa %s650, 1
    %652 = vsyncpa [#allocation5], 1
    %s653 = scalar_lea.sflag [#allocation5], 1
    %654 = vsyncpa %s653, 1
    %655 = vsyncpa [#allocation11], 1
    %s656 = scalar_lea.sflag [#allocation11], 1
    %657 = vsyncpa %s656, 1

</llo_original>
